<compile_context>
chip_gen: v7x
topology: tpu7x:2x2x1
jax: 0.10.0
libtpu: 0.0.40
codegen_flags: <defaults>
</compile_context>

<pallas_src>
import functools

import jax
import jax.numpy as jnp
from jax import lax
from jax.experimental import pallas as pl
from jax.experimental.pallas import tpu as pltpu

LANE = 128
SUB = 8
_CHUNK_ROWS = 1024  # rows per inner accumulation step -> ~0.5 MiB f32 values


def _sigmoid1(x):
    # Single EUP (tanh) push per vreg; exp+recip would be two.
    return 0.5 * jnp.tanh(0.5 * x) + 0.5


def _jaccard_kernel(pred_ref, targ_ref, inter_out, total_out,
                    inter_acc, total_acc, *,
                    row_tile, chunk_rows, kps, grid_k, has_dup, apply_sigmoid,
                    needs_tail, g_ok, tail_r_full, tail_has_partial,
                    tail_lane_rem):
    s = pl.program_id(1)          # reduction split (dual-TC when bs == 1)
    k = pl.program_id(2)          # reduction step within the split
    gk = s * kps + k              # global block index along the reduction

    @pl.when(k == 0)
    def _():
        inter_acc[...] = jnp.zeros_like(inter_acc)
        total_acc[...] = jnp.zeros_like(total_acc)

    def _acc(start, nrows):
        # Accumulate `nrows` (multiple of 8) rows starting at `start` of the
        # resident block.  VPU-only: elementwise mul/add folded with a
        # leading-axis (vreg-wise) sum into the (8,128) partial accumulators.
        p = pred_ref[:, pl.ds(start, nrows), :].astype(jnp.float32)
        t = targ_ref[:, pl.ds(start, nrows), :].astype(jnp.float32)
        if apply_sigmoid:
            p = _sigmoid1(p)
        p = p.reshape(nrows // SUB, SUB, LANE)
        t = t.reshape(nrows // SUB, SUB, LANE)
        inter_acc[...] += jnp.sum(p * t, axis=0)
        total_acc[...] += jnp.sum(p + t, axis=0)

    def _acc_range(nrows):
        # Chunked accumulation over rows [0, nrows) of the block; keeps f32
        # intermediates bounded (~0.5 MiB) even with 4 MiB input blocks.
        n_full = nrows // chunk_rows
        rem = nrows - n_full * chunk_rows
        if n_full == 1:
            _acc(0, chunk_rows)
        elif n_full > 1:
            def body(c, carry):
                _acc(pl.multiple_of(c * chunk_rows, chunk_rows), chunk_rows)
                return carry
            lax.fori_loop(0, n_full, body, 0)
        if rem > 0:
            _acc(n_full * chunk_rows, rem)

    def _acc_masked_tail():
        # Single (8,128) group containing the last partially-valid rows of the
        # globally last block (ragged rows and/or sigmoid-remapped lane pad).
        start = g_ok * SUB
        p = pred_ref[:, pl.ds(start, SUB), :].astype(jnp.float32).reshape(SUB, LANE)
        t = targ_ref[:, pl.ds(start, SUB), :].astype(jnp.float32).reshape(SUB, LANE)
        if apply_sigmoid:
            p = _sigmoid1(p)
        row = lax.broadcasted_iota(jnp.int32, (SUB, LANE), 0)
        mask = row < tail_r_full
        if tail_has_partial:
            lane = lax.broadcasted_iota(jnp.int32, (SUB, LANE), 1)
            mask = mask | ((row == tail_r_full) & (lane < tail_lane_rem))
        p = jnp.where(mask, p, 0.0)
        t = jnp.where(mask, t, 0.0)
        inter_acc[...] += p * t
        total_acc[...] += p + t

    if needs_tail:
        # Only the globally LAST block contains out-of-bounds rows / lane pad;
        # all earlier blocks take the unmasked fast path.  Blocks with
        # gk > grid_k-1 are clamped duplicates (split remainder) and skipped.
        if grid_k > 1:
            @pl.when(gk < grid_k - 1)
            def _():
                _acc_range(row_tile)

        @pl.when(gk == grid_k - 1)
        def _():
            if g_ok > 0:
                _acc_range(g_ok * SUB)          # fully-valid unmasked prefix
            if tail_r_full > 0 or tail_has_partial:
                _acc_masked_tail()              # one masked (8,128) group
    else:
        if has_dup:
            @pl.when(gk < grid_k)
            def _():
                _acc_range(row_tile)
        else:
            _acc_range(row_tile)

    @pl.when(k == kps - 1)
    def _():
        # Write this split's (8,128) partial sums; the scalar reduce and the
        # loss formula run in the (tiny) XLA epilogue in the wrapper.
        inter_out[...] = inter_acc[...].reshape(inter_out.shape)
        total_out[...] = total_acc[...].reshape(total_out.shape)


def jaccard_loss_ref(pred, target, *, per_volume=False, apply_sigmoid=False):
    """Pure-JAX reference mirroring the PyTorch module exactly."""
    if apply_sigmoid:
        pred = jax.nn.sigmoid(pred)
    bs = pred.shape[0] if per_volume else 1
    eps = 0.001
    o = pred.reshape(bs, -1).astype(jnp.float32)
    t = target.reshape(bs, -1).astype(jnp.float32)
    inter = jnp.sum(o * t, axis=1)
    return 1.0 - (inter + eps) / (jnp.sum(o + t, axis=1) - inter + eps)


def jaccard_loss(pred, target, *, per_volume=False, apply_sigmoid=False,
                 row_tile=None, small_input_threshold=1 << 20):
    """Pallas implementation of JaccardLoss.forward.

    weight / size_average / min_pixels are unused by the PyTorch forward and
    are therefore not modeled here.
    """
    bs = pred.shape[0] if per_volume else 1

    # Keep native dtypes; the kernel upcasts to f32 at load so bf16/int8
    # inputs move fewer HBM bytes.  (No wrapper-side cast: that would be an
    # extra HBM read+write of its own.)
    p = pred.reshape(bs, -1)
    t = target.reshape(bs, -1)
    L = p.shape[1]
    eps = 0.001

    if L < small_input_threshold:
        # Fixed pallas_call / pipeline setup dominates tiny reductions; the
        # XLA-fused reduction is faster at these sizes.
        return jaccard_loss_ref(pred, target, per_volume=per_volume,
                                apply_sigmoid=apply_sigmoid)

    # Pad only to the lane multiple (<= 127 elements).  Lane-aligned inputs
    # (the common case) avoid any HBM copy; row raggedness of the last block
    # is handled by the in-kernel tail mask.
    rows = pl.cdiv(L, LANE)
    if rows * LANE != L:
        # TODO(synk): a flat-layout kernel could avoid this full copy for
        # lane-ragged inputs as well.
        padw = rows * LANE - L
        p = jnp.pad(p, ((0, 0), (0, padw)))
        t = jnp.pad(t, ((0, 0), (0, padw)))
    p = p.reshape(bs, rows, LANE)
    t = t.reshape(bs, rows, LANE)

    # ~4 MiB per input block, scaled by the widest input dtype.
    if row_tile is None:
        widest = max(jnp.dtype(p.dtype).itemsize, jnp.dtype(t.dtype).itemsize)
        row_tile = (4 * 1024 * 1024) // (LANE * widest)
    assert row_tile % SUB == 0 and row_tile >= SUB
    rows8 = pl.cdiv(rows, SUB) * SUB
    rt = min(row_tile, rows8)
    grid_k = pl.cdiv(rows, rt)

    # Split the reduction in two when the batch axis alone cannot occupy both
    # TensorCores of a v7x megacore (bs == 1 is the default config).
    # Harmless on single-TC v5e/v6e.
    n_split = 2 if (bs == 1 and grid_k >= 2) else 1
    kps = pl.cdiv(grid_k, n_split)
    has_dup = n_split * kps > grid_k          # clamped duplicate trailing blocks

    lane_rem = L % LANE
    needs_lane_mask = apply_sigmoid and lane_rem != 0   # sigmoid(0) != 0
    needs_row_mask = grid_k * rt > rows                 # last block over-reads
    needs_tail = needs_lane_mask or needs_row_mask

    # Static geometry of the globally last block.
    last_start = (grid_k - 1) * rt
    n_ok = ((L // LANE) if needs_lane_mask else rows) - last_start
    g_ok = n_ok // SUB
    tail_r_full = n_ok - g_ok * SUB

    kernel = functools.partial(
        _jaccard_kernel, row_tile=rt, chunk_rows=_CHUNK_ROWS, kps=kps,
        grid_k=grid_k, has_dup=has_dup, apply_sigmoid=apply_sigmoid,
        needs_tail=needs_tail, g_ok=g_ok, tail_r_full=tail_r_full,
        tail_has_partial=needs_lane_mask, tail_lane_rem=lane_rem)

    if has_dup:
        def in_idx(b, s, k):
            return (b, jnp.minimum(s * kps + k, grid_k - 1), 0)
    else:
        def in_idx(b, s, k):
            return (b, s * kps + k, 0)

    inter_p, total_p = pl.pallas_call(
        kernel,
        out_shape=(jax.ShapeDtypeStruct((bs, n_split, SUB, LANE), jnp.float32),
                   jax.ShapeDtypeStruct((bs, n_split, SUB, LANE), jnp.float32)),
        grid_spec=pltpu.PrefetchScalarGridSpec(
            num_scalar_prefetch=0,
            grid=(bs, n_split, kps),
            in_specs=[pl.BlockSpec((1, rt, LANE), in_idx),
                      pl.BlockSpec((1, rt, LANE), in_idx)],
            out_specs=[pl.BlockSpec((1, 1, SUB, LANE), lambda b, s, k: (b, s, 0, 0)),
                       pl.BlockSpec((1, 1, SUB, LANE), lambda b, s, k: (b, s, 0, 0))],
            scratch_shapes=[pltpu.VMEM((SUB, LANE), jnp.float32),
                            pltpu.VMEM((SUB, LANE), jnp.float32)]),
        compiler_params=pltpu.CompilerParams(
            dimension_semantics=("parallel", "parallel", "arbitrary"),
            vmem_limit_bytes=32 * 1024 * 1024),  # safe on v5e/v6e/v7x
    )(p, t)

    # Tiny epilogue: combine per-split (8,128) partials and apply the loss.
    inter = jnp.sum(inter_p, axis=(1, 2, 3))
    total = jnp.sum(total_p, axis=(1, 2, 3))
    return 1.0 - (inter + eps) / (total - inter + eps)


if __name__ == "__main__":
    key = jax.random.PRNGKey(0)
    k1, k2, k3, k4, k5, k6 = jax.random.split(key, 6)

    # Default PyTorch config (per_volume=False, apply_sigmoid=False), lane-aligned.
    B, C, H, W = 2, 4, 16, 16
    pred = jax.random.uniform(k1, (B, C, H, W), dtype=jnp.float32)
    target = (jax.random.uniform(k2, (B, C, H, W)) > 0.5).astype(jnp.float32)
    out = jax.block_until_ready(jaccard_loss(pred, target, small_input_threshold=0))
    ref = jaccard_loss_ref(pred, target)
    assert out.shape == (1,), out.shape
    assert jnp.allclose(out, ref, rtol=1e-5, atol=1e-5), (out, ref)

    # Small-input fallback path (default threshold -> fused pure-JAX).
    out_fb = jax.block_until_ready(jaccard_loss(pred, target))
    assert jnp.allclose(out_fb, ref, rtol=1e-5, atol=1e-5), (out_fb, ref)

    # per_volume + apply_sigmoid with a ragged flattened length: exercises the
    # lane pad + masked-tail path.
    logits = jax.random.normal(k3, (2, 3, 15, 17), dtype=jnp.float32)
    targ2 = (jax.random.uniform(k4, (2, 3, 15, 17)) > 0.5).astype(jnp.float32)
    out2 = jax.block_until_ready(
        jaccard_loss(logits, targ2, per_volume=True, apply_sigmoid=True,
                     small_input_threshold=0))
    ref2 = jaccard_loss_ref(logits, targ2, per_volume=True, apply_sigmoid=True)
    assert out2.shape == (2,), out2.shape
    assert jnp.allclose(out2, ref2, rtol=1e-5, atol=1e-5), (out2, ref2)

    # Larger input: multi-block reduction, chunked accumulate, dual-TC split
    # (bs == 1) and the unmasked-prefix tail path.
    pred3 = jax.random.uniform(k5, (1, 3, 512, 768), dtype=jnp.float32)
    targ3 = (jax.random.uniform(k6, (1, 3, 512, 768)) > 0.5).astype(jnp.float32)
    out3 = jax.block_until_ready(jaccard_loss(pred3, targ3, small_input_threshold=0))
    ref3 = jaccard_loss_ref(pred3, targ3)
    assert out3.shape == (1,), out3.shape
    assert jnp.allclose(out3, ref3, rtol=1e-4, atol=1e-4), (out3, ref3)

    print("KERNEL_OK")
</pallas_src>

<mosaic_0001>
module attributes {stable_mosaic.version = 11 : i64} {
  func.func @_jaccard_kernel(%arg0: i32, %arg1: i32, %arg2: i32, %arg3: memref<1x16x128xf32, #tpu.memory_space<vmem>>, %arg4: memref<1x16x128xf32, #tpu.memory_space<vmem>>, %arg5: memref<1x1x8x128xf32, #tpu.memory_space<vmem>>, %arg6: memref<1x1x8x128xf32, #tpu.memory_space<vmem>>, %arg7: memref<8x128xf32, #tpu.memory_space<vmem>>, %arg8: memref<8x128xf32, #tpu.memory_space<vmem>>) attributes {dimension_semantics = [#tpu.dimension_semantics<parallel>, #tpu.dimension_semantics<parallel>, #tpu.dimension_semantics<arbitrary>], iteration_bounds = array<i64: 1, 1, 1>, scalar_prefetch = 0 : i64, scratch_operands = 2 : i64, tpu.core_type = #tpu.core_type<tc>, window_params = [{transform_indices = @transform_0, window_bounds = array<i64: 1, 16, 128>}, {transform_indices = @transform_1, window_bounds = array<i64: 1, 16, 128>}, {transform_indices = @transform_2, window_bounds = array<i64: 1, 1, 8, 128>}, {transform_indices = @transform_3, window_bounds = array<i64: 1, 1, 8, 128>}]} {
    %c0_i32 = arith.constant 0 : i32
    %0 = arith.cmpi eq, %arg2, %c0_i32 : i32
    %1 = arith.extui %0 : i1 to i32
    %c0_i32_0 = arith.constant 0 : i32
    %2 = arith.cmpi ne, %1, %c0_i32_0 : i32
    scf.if %2 {
      %cst_17 = arith.constant 0.000000e+00 : f32
      %20 = vector.broadcast %cst_17 : f32 to vector<8x128xf32>
      %c0_18 = arith.constant 0 : index
      %c0_19 = arith.constant 0 : index
      %21 = vector.load %arg7[%c0_18, %c0_19] : memref<8x128xf32, #tpu.memory_space<vmem>>, vector<8x128xf32>
      tpu.vector_store %arg7[%c0_18, %c0_19], %20 {strides = array<i32>} : memref<8x128xf32, #tpu.memory_space<vmem>>, vector<8x128xf32>,
      %cst_20 = arith.constant 0.000000e+00 : f32
      %22 = vector.broadcast %cst_20 : f32 to vector<8x128xf32>
      %c0_21 = arith.constant 0 : index
      %c0_22 = arith.constant 0 : index
      %23 = vector.load %arg8[%c0_21, %c0_22] : memref<8x128xf32, #tpu.memory_space<vmem>>, vector<8x128xf32>
      tpu.vector_store %arg8[%c0_21, %c0_22], %22 {strides = array<i32>} : memref<8x128xf32, #tpu.memory_space<vmem>>, vector<8x128xf32>,
    } else {
    }
    %c0 = arith.constant 0 : index
    %c0_1 = arith.constant 0 : index
    %c0_2 = arith.constant 0 : index
    %3 = vector.load %arg3[%c0, %c0_1, %c0_2] : memref<1x16x128xf32, #tpu.memory_space<vmem>>, vector<1x16x128xf32>
    %c0_3 = arith.constant 0 : index
    %c0_4 = arith.constant 0 : index
    %c0_5 = arith.constant 0 : index
    %4 = vector.load %arg4[%c0_3, %c0_4, %c0_5] : memref<1x16x128xf32, #tpu.memory_space<vmem>>, vector<1x16x128xf32>
    %5 = vector.shape_cast %3 : vector<1x16x128xf32> to vector<2x8x128xf32>
    %6 = vector.shape_cast %4 : vector<1x16x128xf32> to vector<2x8x128xf32>
    %c0_6 = arith.constant 0 : index
    %c0_7 = arith.constant 0 : index
    %7 = vector.load %arg7[%c0_6, %c0_7] : memref<8x128xf32, #tpu.memory_space<vmem>>, vector<8x128xf32>
    %8 = arith.mulf %5, %6 : vector<2x8x128xf32>
    %cst = arith.constant dense<0.000000e+00> : vector<8x128xf32>
    %9 = vector.multi_reduction <add>, %8, %cst [0] : vector<2x8x128xf32> to vector<8x128xf32>
    %10 = arith.addf %7, %9 : vector<8x128xf32>
    %c0_8 = arith.constant 0 : index
    %c0_9 = arith.constant 0 : index
    %11 = vector.load %arg7[%c0_8, %c0_9] : memref<8x128xf32, #tpu.memory_space<vmem>>, vector<8x128xf32>
    tpu.vector_store %arg7[%c0_8, %c0_9], %10 {strides = array<i32>} : memref<8x128xf32, #tpu.memory_space<vmem>>, vector<8x128xf32>,
    %c0_10 = arith.constant 0 : index
    %c0_11 = arith.constant 0 : index
    %12 = vector.load %arg8[%c0_10, %c0_11] : memref<8x128xf32, #tpu.memory_space<vmem>>, vector<8x128xf32>
    %13 = arith.addf %5, %6 : vector<2x8x128xf32>
    %cst_12 = arith.constant dense<0.000000e+00> : vector<8x128xf32>
    %14 = vector.multi_reduction <add>, %13, %cst_12 [0] : vector<2x8x128xf32> to vector<8x128xf32>
    %15 = arith.addf %12, %14 : vector<8x128xf32>
    %c0_13 = arith.constant 0 : index
    %c0_14 = arith.constant 0 : index
    %16 = vector.load %arg8[%c0_13, %c0_14] : memref<8x128xf32, #tpu.memory_space<vmem>>, vector<8x128xf32>
    tpu.vector_store %arg8[%c0_13, %c0_14], %15 {strides = array<i32>} : memref<8x128xf32, #tpu.memory_space<vmem>>, vector<8x128xf32>,
    %c0_i32_15 = arith.constant 0 : i32
    %17 = arith.cmpi eq, %arg2, %c0_i32_15 : i32
    %18 = arith.extui %17 : i1 to i32
    %c0_i32_16 = arith.constant 0 : i32
    %19 = arith.cmpi ne, %18, %c0_i32_16 : i32
    scf.if %19 {
      %c0_17 = arith.constant 0 : index
      %c0_18 = arith.constant 0 : index
      %20 = vector.load %arg7[%c0_17, %c0_18] : memref<8x128xf32, #tpu.memory_space<vmem>>, vector<8x128xf32>
      %21 = vector.shape_cast %20 : vector<8x128xf32> to vector<1x1x8x128xf32>
      %c0_19 = arith.constant 0 : index
      %c0_20 = arith.constant 0 : index
      %c0_21 = arith.constant 0 : index
      %c0_22 = arith.constant 0 : index
      %22 = vector.load %arg5[%c0_19, %c0_20, %c0_21, %c0_22] : memref<1x1x8x128xf32, #tpu.memory_space<vmem>>, vector<1x1x8x128xf32>
      tpu.vector_store %arg5[%c0_19, %c0_20, %c0_21, %c0_22], %21 {strides = array<i32>} : memref<1x1x8x128xf32, #tpu.memory_space<vmem>>, vector<1x1x8x128xf32>,
      %c0_23 = arith.constant 0 : index
      %c0_24 = arith.constant 0 : index
      %23 = vector.load %arg8[%c0_23, %c0_24] : memref<8x128xf32, #tpu.memory_space<vmem>>, vector<8x128xf32>
      %24 = vector.shape_cast %23 : vector<8x128xf32> to vector<1x1x8x128xf32>
      %c0_25 = arith.constant 0 : index
      %c0_26 = arith.constant 0 : index
      %c0_27 = arith.constant 0 : index
      %c0_28 = arith.constant 0 : index
      %25 = vector.load %arg6[%c0_25, %c0_26, %c0_27, %c0_28] : memref<1x1x8x128xf32, #tpu.memory_space<vmem>>, vector<1x1x8x128xf32>
      tpu.vector_store %arg6[%c0_25, %c0_26, %c0_27, %c0_28], %24 {strides = array<i32>} : memref<1x1x8x128xf32, #tpu.memory_space<vmem>>, vector<1x1x8x128xf32>,
    } else {
    }
    return
  }
  func.func @transform_0(%arg0: i32, %arg1: i32, %arg2: i32) -> (i32, i32, i32) {
    %c1_i32 = arith.constant 1 : i32
    %0 = arith.muli %arg1, %c1_i32 : i32
    %1 = arith.addi %0, %arg2 : i32
    %c0_i32 = arith.constant 0 : i32
    %c0_i32_0 = arith.constant 0 : i32
    return %arg0, %1, %c0_i32 : i32, i32, i32
  }
  func.func @transform_1(%arg0: i32, %arg1: i32, %arg2: i32) -> (i32, i32, i32) {
    %c1_i32 = arith.constant 1 : i32
    %0 = arith.muli %arg1, %c1_i32 : i32
    %1 = arith.addi %0, %arg2 : i32
    %c0_i32 = arith.constant 0 : i32
    %c0_i32_0 = arith.constant 0 : i32
    return %arg0, %1, %c0_i32 : i32, i32, i32
  }
  func.func @transform_2(%arg0: i32, %arg1: i32, %arg2: i32) -> (i32, i32, i32, i32) {
    %c0_i32 = arith.constant 0 : i32
    %c0_i32_0 = arith.constant 0 : i32
    %c0_i32_1 = arith.constant 0 : i32
    return %arg0, %arg1, %c0_i32, %c0_i32_0 : i32, i32, i32, i32
  }
  func.func @transform_3(%arg0: i32, %arg1: i32, %arg2: i32) -> (i32, i32, i32, i32) {
    %c0_i32 = arith.constant 0 : i32
    %c0_i32_0 = arith.constant 0 : i32
    %c0_i32_1 = arith.constant 0 : i32
    return %arg0, %arg1, %c0_i32, %c0_i32_0 : i32, i32, i32, i32
  }
}

</mosaic_0001>

<llo_original>
// kernel: tpu_custom_call.1
$region0: #{tpu_custom_call.1}
  #allocation0 [shape = 'u32[]', space=smem, size = 0x4, offset = 0x4, fixed_abs, tag = 'smem constant byte address 0x4 - core index']
  #allocation1 [shape = 'u32[144,128]{1,0:T(1,128)}', space=vmem, size = 0x12000, scoped, tag = 'internal scratch']
  #allocation2 [shape = 'f32[8,128]{1,0:T(8,128)}', space=vmem, size = 0x1000, scoped, tag = 'scratch operand']
  #allocation3 [shape = 'f32[8,128]{1,0:T(8,128)}', space=vmem, size = 0x1000, scoped, tag = 'scratch operand']
  %s0 = inlined_call_operand.hbm [shape: f32[1,16,128], index: 0, kind: input, shape index: {}]
  %s1 = inlined_call_operand.hbm [shape: f32[1,16,128], index: 1, kind: input, shape index: {}]
  %s2 = inlined_call_operand.hbm [shape: f32[1,1,8,128], index: 2, kind: output, shape index: {0}]
  %s3 = inlined_call_operand.hbm [shape: f32[1,1,8,128], index: 3, kind: output, shape index: {1}]
  %4 = xla_tuple %s2, %s3
  %s5 = sld [smem:[#allocation0]]
  $region42: #{tpu_custom_call.1} parent=0
    _
  %s7 = ssub.s32 1, %s5
  %s8 = scalar_select 0, %s7, %s5
  $region1: #{tpu_custom_call.1} parent=0
    #allocation4 [shape = 'u8[8192]{0}', space=vmem, size = 0x2000, scoped, tag = 'input window, operand 0, single buffered']
    #allocation5 [shape = 's32[1]{0}', space=sflag, size = 0x4, scoped, tag = 'scoped memory for tpu_custom_call.1']
    #allocation6 [shape = 's32[1]{0}', space=sflag, size = 0x4, scoped, tag = 'scoped memory for tpu_custom_call.1']
    #allocation7 [shape = 'u8[8192]{0}', space=vmem, size = 0x2000, scoped, tag = 'input window, operand 1, single buffered']
    #allocation8 [shape = 's32[1]{0}', space=sflag, size = 0x4, scoped, tag = 'scoped memory for tpu_custom_call.1']
    #allocation9 [shape = 'u8[4096]{0}', space=vmem, size = 0x1000, scoped, tag = 'output window, operand 0, single buffered']
    #allocation10 [shape = 'u8[4096]{0}', space=vmem, size = 0x1000, scoped, tag = 'output window, operand 1, single buffered']
    #allocation11 [shape = 's32[1]{0}', space=sflag, size = 0x4, scoped, tag = 'scoped memory for tpu_custom_call.1']
    %9 = vsyncpa [#allocation5], 0
    %10 = vsyncpa [#allocation8], 0
    %11 = vsyncpa [#allocation6], 0
    %12 = vsyncpa [#allocation11], 0
    // Predicated region
    $region2: #{tpu_custom_call.1} parent=1 // pred_check
      _
    $region3: #{tpu_custom_call.1} parent=1 // pred_check_branch
      %14 = sbr.rel (0) target = $region5
    $region4: #{tpu_custom_call.1} parent=1 // pred_region
      %s15 = sadd.s32 0, 0
      %s16 = smul.u32 2, %s15
      %s18 = ssub.s32 256, 256
      %19 = vsyncadd [#allocation5], %s18
      %s20 = smul.addr %s16, 128
      %s21 = scalar_lea.hbm %s0, %s20
      %s22 = sshll.u32 [#allocation4], 4
      %s23 = int_to_ptr.vmem [resolvable:$true] %s22
      %28 = dma.hbm_to_vmem [thread:$0]  %s21, 256, %s23, [#allocation5], 128, 128, 8
    $region5: #{tpu_custom_call.1} parent=1 // pred_fallthru
      _
    // Predicated region
    $region6: #{tpu_custom_call.1} parent=1 // pred_check
      _
    $region7: #{tpu_custom_call.1} parent=1 // pred_check_branch
      %30 = sbr.rel (0) target = $region9
    $region8: #{tpu_custom_call.1} parent=1 // pred_region
      %s31 = sadd.s32 0, 0
      %s32 = smul.u32 2, %s31
      %s34 = ssub.s32 256, 256
      %35 = vsyncadd [#allocation8], %s34
      %s36 = smul.addr %s32, 128
      %s37 = scalar_lea.hbm %s1, %s36
      %s38 = sshll.u32 [#allocation7], 4
      %s39 = int_to_ptr.vmem [resolvable:$true] %s38
      %44 = dma.hbm_to_vmem [thread:$0]  %s37, 256, %s39, [#allocation8], 128, 128, 8
    $region9: #{tpu_custom_call.1} parent=1 // pred_fallthru
      _
    // Predicated region
    $region10: #{tpu_custom_call.1} parent=1 // pred_check
      _
    $region11: #{tpu_custom_call.1} parent=1 // pred_check_branch
      %46 = sbr.rel (0) target = $region13
    $region12: #{tpu_custom_call.1} parent=1 // pred_region
      %47 = dma.done [#allocation5], 256
    $region13: #{tpu_custom_call.1} parent=1 // pred_fallthru
      _
    // Predicated region
    $region14: #{tpu_custom_call.1} parent=1 // pred_check
      _
    $region15: #{tpu_custom_call.1} parent=1 // pred_check_branch
      %49 = sbr.rel (0) target = $region17
    $region16: #{tpu_custom_call.1} parent=1 // pred_region
      %50 = dma.done [#allocation8], 256
    $region17: #{tpu_custom_call.1} parent=1 // pred_fallthru
      _
    %s51 = sadd.s32 0, 0
    %s52 = smul.u32 2, %s51
    %s53 = sadd.s32 0, 0
    %s54 = smul.u32 2, %s53
    %p55 = scmp.eq.s32.totalorder 0, 0
    // Predicated region
    $region18: #{tpu_custom_call.1} parent=1 // pred_check
      %p56 = pneg %p55
    $region19: #{tpu_custom_call.1} parent=1 // pred_check_branch
      %58 = sbr.rel (%p56) target = $region21
    $region20: #{tpu_custom_call.1} parent=1 // pred_region
      %59 = vst [vmem:[#allocation2] sm:$0xff] 0.0
      %60 = vst [vmem:[#allocation3] sm:$0xff] 0.0
    $region21: #{tpu_custom_call.1} parent=1 // pred_fallthru
      _
    %v61 = vld [vmem:[#allocation4] sm:$0xff]
    %v62 = vld [vmem:[#allocation4 + $0x8] sm:$0xff]
    %v63 = vld [vmem:[#allocation7] sm:$0xff]
    %v64 = vld [vmem:[#allocation7 + $0x8] sm:$0xff]
    %v65 = vld [vmem:[#allocation2] sm:$0xff]
    %v66 = vmul.f32 %v61, %v63
    %v67 = vmul.f32 %v62, %v64
    %v68 = vadd.f32 %v66, %v67
    %v69 = vadd.f32 %v65, %v68
    %70 = vst [vmem:[#allocation2] sm:$0xff] %v69
    %v71 = vld [vmem:[#allocation3] sm:$0xff]
    %v72 = vadd.f32 %v61, %v63
    %v73 = vadd.f32 %v62, %v64
    %v74 = vadd.f32 %v72, %v73
    %v75 = vadd.f32 %v71, %v74
    %76 = vst [vmem:[#allocation3] sm:$0xff] %v75
    // Predicated region
    $region22: #{tpu_custom_call.1} parent=1 // pred_check
      %p77 = pneg %p55
    $region23: #{tpu_custom_call.1} parent=1 // pred_check_branch
      %79 = sbr.rel (%p77) target = $region25
    $region24: #{tpu_custom_call.1} parent=1 // pred_region
      %v80 = vld [vmem:[#allocation2] sm:$0xff]
      %81 = vst [vmem:[#allocation9] sm:$0xff] %v80
      %v82 = vld [vmem:[#allocation3] sm:$0xff]
      %83 = vst [vmem:[#allocation10] sm:$0xff] %v82
    $region25: #{tpu_custom_call.1} parent=1 // pred_fallthru
      _
    // Predicated region
    $region26: #{tpu_custom_call.1} parent=1 // pred_check
      _
    $region27: #{tpu_custom_call.1} parent=1 // pred_check_branch
      %85 = sbr.rel (0) target = $region29
    $region28: #{tpu_custom_call.1} parent=1 // pred_region
      %s87 = ssub.s32 128, 128
      %88 = vsyncadd [#allocation6], %s87
      %s90 = sshll.u32 [#allocation9], 4
      %s91 = int_to_ptr.vmem [resolvable:$true] %s90
      %93 = dma.vmem_to_hbm [thread:$0]  %s91, 128, %s2, [#allocation6]
    $region29: #{tpu_custom_call.1} parent=1 // pred_fallthru
      _
    // Predicated region
    $region30: #{tpu_custom_call.1} parent=1 // pred_check
      _
    $region31: #{tpu_custom_call.1} parent=1 // pred_check_branch
      %95 = sbr.rel (0) target = $region33
    $region32: #{tpu_custom_call.1} parent=1 // pred_region
      %s97 = ssub.s32 128, 128
      %98 = vsyncadd [#allocation11], %s97
      %s100 = sshll.u32 [#allocation10], 4
      %s101 = int_to_ptr.vmem [resolvable:$true] %s100
      %103 = dma.vmem_to_hbm [thread:$0]  %s101, 128, %s3, [#allocation11]
    $region33: #{tpu_custom_call.1} parent=1 // pred_fallthru
      _
    // Predicated region
    $region34: #{tpu_custom_call.1} parent=1 // pred_check
      _
    $region35: #{tpu_custom_call.1} parent=1 // pred_check_branch
      %105 = sbr.rel (0) target = $region37
    $region36: #{tpu_custom_call.1} parent=1 // pred_region
      %106 = dma.done [#allocation6], 128
    $region37: #{tpu_custom_call.1} parent=1 // pred_fallthru
      _
    // Predicated region
    $region38: #{tpu_custom_call.1} parent=1 // pred_check
      _
    $region39: #{tpu_custom_call.1} parent=1 // pred_check_branch
      %108 = sbr.rel (0) target = $region41
    $region40: #{tpu_custom_call.1} parent=1 // pred_region
      %109 = dma.done [#allocation11], 128
    $region41: #{tpu_custom_call.1} parent=1 // pred_fallthru
      _
    %110 = vsyncpa [#allocation5], 1
    %111 = vsyncpa [#allocation8], 1
    %112 = vsyncpa [#allocation6], 1
    %113 = vsyncpa [#allocation11], 1

</llo_original>
